<compile_context>
chip_gen: v7x
topology: tpu7x:2x2x1
jax: 0.10.0
libtpu: 0.0.40
codegen_flags: <defaults>
</compile_context>

<pallas_src>
import jax
import jax.numpy as jnp
from jax.experimental import pallas as pl
from jax.experimental.pallas import tpu as pltpu


def _round_up(x, m):
    return ((x + m - 1) // m) * m


# Only force a multi-step grid (to feed v7x's 2 TensorCores) once there is
# enough work per core to amortize the ~0.35 us per-grid-step overhead.
_MIN_ROWS_FOR_SPLIT = 2048


def _choose_row_tile(M, row_tile):
    """Row tile: multiple of 16, grid >= 2 and even once M is large enough."""
    tm = _round_up(min(row_tile, max(M, 1)), 16)
    steps = pl.cdiv(M, tm)
    if M >= _MIN_ROWS_FOR_SPLIT and steps < 2:
        steps = 2                       # v7x: keep both TensorCores busy
    if steps > 1 and steps % 2 == 1:
        steps += 1                      # even step count balances the 2 TCs
    return _round_up(pl.cdiv(M, steps), 16)


def _mlp_kernel(x_ref,
                w1_ref, b1_ref,
                w2_ref, b2_ref,
                w3_ref, b3_ref,
                w4_ref, b4_ref,
                o_ref):
    """Fused 4-layer MLP: 3x (Linear + ReLU) followed by a final Linear.

    Matmul operands are bf16 (MXU fast path) with f32 accumulation; bias-add
    and ReLU run in f32 on the VPU. Dropout(p) == identity in eval mode.
    """
    # Hidden layer 1 (x tile is already bf16 from the wrapper; K=32 is left
    # un-padded on purpose — layer 1 is ~5% of total FLOPs, padding D to 128
    # would 4x the x traffic for nothing).
    h = jnp.dot(x_ref[...], w1_ref[...],
                preferred_element_type=jnp.float32) + b1_ref[...]
    h = jnp.maximum(h, 0.0)

    # Hidden layer 2
    h = jnp.dot(h.astype(w2_ref.dtype), w2_ref[...],
                preferred_element_type=jnp.float32) + b2_ref[...]
    h = jnp.maximum(h, 0.0)

    # Hidden layer 3
    h = jnp.dot(h.astype(w3_ref.dtype), w3_ref[...],
                preferred_element_type=jnp.float32) + b3_ref[...]
    h = jnp.maximum(h, 0.0)

    # Output projection to features_dim = 64
    # TODO(synk): profile-gated lane-dense packing — view h as (tm//2, 2*H) and
    # use kron(I2, w4) (512 x 128) so the output tile is (tm//2, 128) and the
    # writeback uses unmasked vst; only worth it if vst / output DMA binds.
    out = jnp.dot(h.astype(w4_ref.dtype), w4_ref[...],
                  preferred_element_type=jnp.float32) + b4_ref[...]
    o_ref[...] = out.astype(o_ref.dtype)


def token_compression_policy_forward(x, params, *, row_tile=4096,
                                     matmul_dtype=jnp.bfloat16):
    """Run the TokenCompressionPolicy feature extractor.

    Args:
      x: (batch, seq, input_dim) float32
      params: dict with w1..w4 (in,out) and b1..b4 (1,out), float32
      row_tile: target rows per grid step (rounded to a multiple of 16; the
        grid is forced to >= 2 even steps once batch*seq is large)
      matmul_dtype: dtype for MXU operands (bf16 fast path; accumulation f32;
        pass jnp.float32 for an accuracy-first fallback)

    Returns:
      (batch, seq, 64) float32
    """
    B, S, D = x.shape
    M = B * S

    # Cast first, then pad: the wrapper-side pad copy moves bf16 bytes instead
    # of doing a full f32 pad pass followed by a separate cast pass.
    x2d = x.reshape(M, D).astype(matmul_dtype)

    tm = _choose_row_tile(M, row_tile)
    Mp = _round_up(M, tm)
    if Mp != M:
        x2d = jnp.pad(x2d, ((0, Mp - M), (0, 0)))

    # Weights in bf16 for the MXU, biases stay f32 (VPU add happens in f32).
    w1 = params["w1"].astype(matmul_dtype)
    w2 = params["w2"].astype(matmul_dtype)
    w3 = params["w3"].astype(matmul_dtype)
    w4 = params["w4"].astype(matmul_dtype)
    b1 = params["b1"].astype(jnp.float32)
    b2 = params["b2"].astype(jnp.float32)
    b3 = params["b3"].astype(jnp.float32)
    b4 = params["b4"].astype(jnp.float32)

    H = w1.shape[1]
    F = w4.shape[1]
    grid = (Mp // tm,)

    # Grid-invariant (replicated) full-array blocks for weights / biases.
    # TODO(synk): pipeline_mode=pl.Buffered(1) would drop the second ~0.33 MB
    # weight buffer; skipped since VMEM occupancy (~13 MB at tm=4096) is far
    # below the 48 MiB limit on every generation.
    def rep(shape):
        return pl.BlockSpec(shape, lambda i: (0,) * len(shape))

    # Advisory cost estimate: 3 hidden layers + output projection.
    flops = 2 * Mp * (D * H + 2 * H * H + H * F)
    bytes_accessed = (
        x2d.size * x2d.dtype.itemsize
        + sum(a.size * a.dtype.itemsize for a in (w1, w2, w3, w4, b1, b2, b3, b4))
        + Mp * F * 4
    )
    cost = pl.CostEstimate(flops=flops, transcendentals=0,
                           bytes_accessed=bytes_accessed)

    # TODO(synk): on v5e, emitting a bf16 output (halving the dominant HBM
    # stream) is worthwhile if the consumer tolerates it; kept f32 here.
    out2d = pl.pallas_call(
        _mlp_kernel,
        out_shape=jax.ShapeDtypeStruct((Mp, F), jnp.float32),
        grid_spec=pltpu.PrefetchScalarGridSpec(
            num_scalar_prefetch=0,
            grid=grid,
            in_specs=[
                pl.BlockSpec((tm, D), lambda i: (i, 0)),   # x row tile
                rep(w1.shape), rep(b1.shape),
                rep(w2.shape), rep(b2.shape),
                rep(w3.shape), rep(b3.shape),
                rep(w4.shape), rep(b4.shape),
            ],
            out_specs=pl.BlockSpec((tm, F), lambda i: (i, 0)),
        ),
        compiler_params=pltpu.CompilerParams(
            dimension_semantics=("parallel",),      # rows shard across TCs (v7x)
            vmem_limit_bytes=48 * 1024 * 1024,      # within v7x's 64 MiB physical
        ),
        cost_estimate=cost,
    )(x2d, w1, b1, w2, b2, w3, b3, w4, b4)

    return out2d[:M].reshape(B, S, F)


def init_params(key, input_dim, hidden_dim=256, num_layers=3, features_dim=64):
    """Deterministic parameter init (PyTorch-Linear-like uniform fan-in scaling)."""
    dims = [input_dim] + [hidden_dim] * num_layers + [features_dim]
    params = {}
    for li in range(len(dims) - 1):
        fan_in, fan_out = dims[li], dims[li + 1]
        key, kw, kb = jax.random.split(key, 3)
        bound = 1.0 / jnp.sqrt(fan_in)
        w = jax.random.uniform(kw, (fan_in, fan_out), jnp.float32, -bound, bound)
        b = jax.random.uniform(kb, (1, fan_out), jnp.float32, -bound, bound)
        params[f"w{li + 1}"] = w
        params[f"b{li + 1}"] = b
    return params


def _reference_forward(x, params):
    """Pure-JAX f32 reference for correctness checking."""
    B, S, D = x.shape
    h = x.reshape(B * S, D)
    h = jnp.maximum(h @ params["w1"] + params["b1"], 0.0)
    h = jnp.maximum(h @ params["w2"] + params["b2"], 0.0)
    h = jnp.maximum(h @ params["w3"] + params["b3"], 0.0)
    out = h @ params["w4"] + params["b4"]
    return out.reshape(B, S, -1)


if __name__ == "__main__":
    # Small shapes consistent with the module's forward:
    #   batch=2, seq=8, input_dim=32, hidden_dim=256 (default), features_dim=64
    # NOTE: at this toy M=16 the kernel is pure launch overhead; benchmark at
    # production B*S (thousands of tokens) where the tiling/bf16 changes matter.
    batch, seq, input_dim = 2, 8, 32
    hidden_dim, num_layers = 256, 3

    key = jax.random.PRNGKey(0)
    key, kx = jax.random.split(key)
    x = jax.random.normal(kx, (batch, seq, input_dim), jnp.float32)

    params = init_params(key, input_dim, hidden_dim, num_layers)

    out = jax.block_until_ready(token_compression_policy_forward(x, params))
    ref = _reference_forward(x, params)
    assert out.shape == (batch, seq, 64), out.shape
    # bf16 MXU operands with f32 accumulation -> looser tolerance than pure f32.
    assert jnp.allclose(out, ref, atol=5e-2, rtol=5e-2), "mismatch vs reference"

    # Second check exercising the padded, multi-step tiled path
    # (M=3000 -> 4 even grid steps of 752 rows, with padded tail rows sliced off).
    b2, s2 = 3, 1000
    key, kx2 = jax.random.split(key)
    x2 = jax.random.normal(kx2, (b2, s2, input_dim), jnp.float32)
    out2 = jax.block_until_ready(
        token_compression_policy_forward(x2, params, row_tile=1024))
    ref2 = _reference_forward(x2, params)
    assert out2.shape == (b2, s2, 64), out2.shape
    assert jnp.allclose(out2, ref2, atol=5e-2, rtol=5e-2), "mismatch (tiled path)"

    print("KERNEL_OK")
</pallas_src>

<mosaic_0001>
module attributes {stable_mosaic.version = 11 : i64} {
  func.func @_mlp_kernel(%arg0: i32, %arg1: memref<16x32xbf16, #tpu.memory_space<vmem>>, %arg2: memref<32x256xbf16, #tpu.memory_space<vmem>>, %arg3: memref<1x256xf32, #tpu.memory_space<vmem>>, %arg4: memref<256x256xbf16, #tpu.memory_space<vmem>>, %arg5: memref<1x256xf32, #tpu.memory_space<vmem>>, %arg6: memref<256x256xbf16, #tpu.memory_space<vmem>>, %arg7: memref<1x256xf32, #tpu.memory_space<vmem>>, %arg8: memref<256x64xbf16, #tpu.memory_space<vmem>>, %arg9: memref<1x64xf32, #tpu.memory_space<vmem>>, %arg10: memref<16x64xf32, #tpu.memory_space<vmem>>) attributes {dimension_semantics = [#tpu.dimension_semantics<parallel>], iteration_bounds = array<i64: 1>, scalar_prefetch = 0 : i64, scratch_operands = 0 : i64, tpu.core_type = #tpu.core_type<tc>, window_params = [{transform_indices = @transform_0, window_bounds = array<i64: 16, 32>}, {pipeline_mode = #tpu.pipeline_mode<synchronous>, transform_indices = @transform_1, window_bounds = array<i64: 32, 256>}, {pipeline_mode = #tpu.pipeline_mode<synchronous>, transform_indices = @transform_2, window_bounds = array<i64: 1, 256>}, {pipeline_mode = #tpu.pipeline_mode<synchronous>, transform_indices = @transform_3, window_bounds = array<i64: 256, 256>}, {pipeline_mode = #tpu.pipeline_mode<synchronous>, transform_indices = @transform_4, window_bounds = array<i64: 1, 256>}, {pipeline_mode = #tpu.pipeline_mode<synchronous>, transform_indices = @transform_5, window_bounds = array<i64: 256, 256>}, {pipeline_mode = #tpu.pipeline_mode<synchronous>, transform_indices = @transform_6, window_bounds = array<i64: 1, 256>}, {pipeline_mode = #tpu.pipeline_mode<synchronous>, transform_indices = @transform_7, window_bounds = array<i64: 256, 64>}, {pipeline_mode = #tpu.pipeline_mode<synchronous>, transform_indices = @transform_8, window_bounds = array<i64: 1, 64>}, {transform_indices = @transform_9, window_bounds = array<i64: 16, 64>}]} {
    %c0 = arith.constant 0 : index
    %c0_0 = arith.constant 0 : index
    %0 = vector.load %arg1[%c0, %c0_0] : memref<16x32xbf16, #tpu.memory_space<vmem>>, vector<16x32xbf16>
    %c0_1 = arith.constant 0 : index
    %c0_2 = arith.constant 0 : index
    %1 = vector.load %arg2[%c0_1, %c0_2] : memref<32x256xbf16, #tpu.memory_space<vmem>>, vector<32x256xbf16>
    %cst = arith.constant dense<0.000000e+00> : vector<16x256xf32>
    %2 = tpu.matmul %0, %1, %cst {dimension_numbers = #tpu.dot_dimension_numbers<[1], [0], [0], [1], [0, 0, 1, 1], [], []>} : vector<16x32xbf16>, vector<32x256xbf16>, vector<16x256xf32> -> vector<16x256xf32>
    %c0_3 = arith.constant 0 : index
    %c0_4 = arith.constant 0 : index
    %3 = vector.load %arg3[%c0_3, %c0_4] : memref<1x256xf32, #tpu.memory_space<vmem>>, vector<1x256xf32>
    %4 = vector.broadcast %3 : vector<1x256xf32> to vector<16x256xf32>
    %5 = arith.addf %2, %4 : vector<16x256xf32>
    %cst_5 = arith.constant 0.000000e+00 : f32
    %6 = vector.broadcast %cst_5 : f32 to vector<16x256xf32>
    %7 = arith.maximumf %5, %6 : vector<16x256xf32>
    %8 = arith.truncf %7 : vector<16x256xf32> to vector<16x256xbf16>
    %c0_6 = arith.constant 0 : index
    %c0_7 = arith.constant 0 : index
    %9 = vector.load %arg4[%c0_6, %c0_7] : memref<256x256xbf16, #tpu.memory_space<vmem>>, vector<256x256xbf16>
    %cst_8 = arith.constant dense<0.000000e+00> : vector<16x256xf32>
    %10 = tpu.matmul %8, %9, %cst_8 {dimension_numbers = #tpu.dot_dimension_numbers<[1], [0], [0], [1], [0, 0, 1, 1], [], []>} : vector<16x256xbf16>, vector<256x256xbf16>, vector<16x256xf32> -> vector<16x256xf32>
    %c0_9 = arith.constant 0 : index
    %c0_10 = arith.constant 0 : index
    %11 = vector.load %arg5[%c0_9, %c0_10] : memref<1x256xf32, #tpu.memory_space<vmem>>, vector<1x256xf32>
    %12 = vector.broadcast %11 : vector<1x256xf32> to vector<16x256xf32>
    %13 = arith.addf %10, %12 : vector<16x256xf32>
    %cst_11 = arith.constant 0.000000e+00 : f32
    %14 = vector.broadcast %cst_11 : f32 to vector<16x256xf32>
    %15 = arith.maximumf %13, %14 : vector<16x256xf32>
    %16 = arith.truncf %15 : vector<16x256xf32> to vector<16x256xbf16>
    %c0_12 = arith.constant 0 : index
    %c0_13 = arith.constant 0 : index
    %17 = vector.load %arg6[%c0_12, %c0_13] : memref<256x256xbf16, #tpu.memory_space<vmem>>, vector<256x256xbf16>
    %cst_14 = arith.constant dense<0.000000e+00> : vector<16x256xf32>
    %18 = tpu.matmul %16, %17, %cst_14 {dimension_numbers = #tpu.dot_dimension_numbers<[1], [0], [0], [1], [0, 0, 1, 1], [], []>} : vector<16x256xbf16>, vector<256x256xbf16>, vector<16x256xf32> -> vector<16x256xf32>
    %c0_15 = arith.constant 0 : index
    %c0_16 = arith.constant 0 : index
    %19 = vector.load %arg7[%c0_15, %c0_16] : memref<1x256xf32, #tpu.memory_space<vmem>>, vector<1x256xf32>
    %20 = vector.broadcast %19 : vector<1x256xf32> to vector<16x256xf32>
    %21 = arith.addf %18, %20 : vector<16x256xf32>
    %cst_17 = arith.constant 0.000000e+00 : f32
    %22 = vector.broadcast %cst_17 : f32 to vector<16x256xf32>
    %23 = arith.maximumf %21, %22 : vector<16x256xf32>
    %24 = arith.truncf %23 : vector<16x256xf32> to vector<16x256xbf16>
    %c0_18 = arith.constant 0 : index
    %c0_19 = arith.constant 0 : index
    %25 = vector.load %arg8[%c0_18, %c0_19] : memref<256x64xbf16, #tpu.memory_space<vmem>>, vector<256x64xbf16>
    %cst_20 = arith.constant dense<0.000000e+00> : vector<16x64xf32>
    %26 = tpu.matmul %24, %25, %cst_20 {dimension_numbers = #tpu.dot_dimension_numbers<[1], [0], [0], [1], [0, 0, 1, 1], [], []>} : vector<16x256xbf16>, vector<256x64xbf16>, vector<16x64xf32> -> vector<16x64xf32>
    %c0_21 = arith.constant 0 : index
    %c0_22 = arith.constant 0 : index
    %27 = vector.load %arg9[%c0_21, %c0_22] : memref<1x64xf32, #tpu.memory_space<vmem>>, vector<1x64xf32>
    %28 = vector.broadcast %27 : vector<1x64xf32> to vector<16x64xf32>
    %29 = arith.addf %26, %28 : vector<16x64xf32>
    %c0_23 = arith.constant 0 : index
    %c0_24 = arith.constant 0 : index
    %30 = vector.load %arg10[%c0_23, %c0_24] : memref<16x64xf32, #tpu.memory_space<vmem>>, vector<16x64xf32>
    tpu.vector_store %arg10[%c0_23, %c0_24], %29 {strides = array<i32>} : memref<16x64xf32, #tpu.memory_space<vmem>>, vector<16x64xf32>,
    return
  }
  func.func @transform_0(%arg0: i32) -> (i32, i32) {
    %c0_i32 = arith.constant 0 : i32
    %c0_i32_0 = arith.constant 0 : i32
    return %arg0, %c0_i32 : i32, i32
  }
  func.func @transform_1(%arg0: i32) -> (i32, i32) {
    %c0_i32 = arith.constant 0 : i32
    %c0_i32_0 = arith.constant 0 : i32
    %c0_i32_1 = arith.constant 0 : i32
    return %c0_i32, %c0_i32_0 : i32, i32
  }
  func.func @transform_2(%arg0: i32) -> (i32, i32) {
    %c0_i32 = arith.constant 0 : i32
    %c0_i32_0 = arith.constant 0 : i32
    %c0_i32_1 = arith.constant 0 : i32
    return %c0_i32, %c0_i32_0 : i32, i32
  }
  func.func @transform_3(%arg0: i32) -> (i32, i32) {
    %c0_i32 = arith.constant 0 : i32
    %c0_i32_0 = arith.constant 0 : i32
    %c0_i32_1 = arith.constant 0 : i32
    return %c0_i32, %c0_i32_0 : i32, i32
  }
  func.func @transform_4(%arg0: i32) -> (i32, i32) {
    %c0_i32 = arith.constant 0 : i32
    %c0_i32_0 = arith.constant 0 : i32
    %c0_i32_1 = arith.constant 0 : i32
    return %c0_i32, %c0_i32_0 : i32, i32
  }
  func.func @transform_5(%arg0: i32) -> (i32, i32) {
    %c0_i32 = arith.constant 0 : i32
    %c0_i32_0 = arith.constant 0 : i32
    %c0_i32_1 = arith.constant 0 : i32
    return %c0_i32, %c0_i32_0 : i32, i32
  }
  func.func @transform_6(%arg0: i32) -> (i32, i32) {
    %c0_i32 = arith.constant 0 : i32
    %c0_i32_0 = arith.constant 0 : i32
    %c0_i32_1 = arith.constant 0 : i32
    return %c0_i32, %c0_i32_0 : i32, i32
  }
  func.func @transform_7(%arg0: i32) -> (i32, i32) {
    %c0_i32 = arith.constant 0 : i32
    %c0_i32_0 = arith.constant 0 : i32
    %c0_i32_1 = arith.constant 0 : i32
    return %c0_i32, %c0_i32_0 : i32, i32
  }
  func.func @transform_8(%arg0: i32) -> (i32, i32) {
    %c0_i32 = arith.constant 0 : i32
    %c0_i32_0 = arith.constant 0 : i32
    %c0_i32_1 = arith.constant 0 : i32
    return %c0_i32, %c0_i32_0 : i32, i32
  }
  func.func @transform_9(%arg0: i32) -> (i32, i32) {
    %c0_i32 = arith.constant 0 : i32
    %c0_i32_0 = arith.constant 0 : i32
    return %arg0, %c0_i32 : i32, i32
  }
}

</mosaic_0001>

<llo_original>
// kernel: tpu_custom_call.1
$region0: #{tpu_custom_call.1}
  #allocation0 [shape = 'u32[]', space=smem, size = 0x4, offset = 0x4, fixed_abs, tag = 'smem constant byte address 0x4 - core index']
  #allocation1 [shape = 'u32[144,128]{1,0:T(1,128)}', space=vmem, size = 0x12000, scoped, tag = 'internal scratch']
  %s0 = inlined_call_operand.vmem [shape: bf16[16,32], index: 0, kind: input, shape index: {}]
  %s1 = inlined_call_operand.vmem [shape: bf16[32,256], index: 1, kind: input, shape index: {}]
  %s2 = inlined_call_operand.vmem [shape: f32[1,256], index: 2, kind: input, shape index: {}]
  %s3 = inlined_call_operand.hbm [shape: bf16[256,256], index: 3, kind: input, shape index: {}]
  %s4 = inlined_call_operand.vmem [shape: f32[1,256], index: 4, kind: input, shape index: {}]
  %s5 = inlined_call_operand.hbm [shape: bf16[256,256], index: 5, kind: input, shape index: {}]
  %s6 = inlined_call_operand.vmem [shape: f32[1,256], index: 6, kind: input, shape index: {}]
  %s7 = inlined_call_operand.vmem [shape: bf16[256,64], index: 7, kind: input, shape index: {}]
  %s8 = inlined_call_operand.vmem [shape: f32[1,64], index: 8, kind: input, shape index: {}]
  %s9 = inlined_call_operand.hbm [shape: f32[16,64], index: 9, kind: output, shape index: {}]
  %s10 = sld [smem:[#allocation0]]
  $region54: #{tpu_custom_call.1} parent=0
    _
  %s12 = ssub.s32 1, %s10
  %s13 = scalar_select 0, %s12, %s10
  $region1: #{tpu_custom_call.1} parent=0
    #allocation2 [shape = 'u8[131072]{0}', space=vmem, size = 0x20000, scoped, tag = 'input window, operand 3, single buffered']
    #allocation3 [shape = 's32[1]{0}', space=sflag, size = 0x4, scoped, tag = 'scoped memory for tpu_custom_call.1']
    #allocation4 [shape = 's32[1]{0}', space=sflag, size = 0x4, scoped, tag = 'scoped memory for tpu_custom_call.1']
    #allocation5 [shape = 'u8[131072]{0}', space=vmem, size = 0x20000, scoped, tag = 'input window, operand 5, single buffered']
    #allocation6 [shape = 's32[1]{0}', space=sflag, size = 0x4, scoped, tag = 'scoped memory for tpu_custom_call.1']
    #allocation7 [shape = 'u8[8192]{0}', space=vmem, size = 0x2000, scoped, tag = 'output window, operand 0, single buffered']
    %14 = vsyncpa [#allocation3], 0
    %15 = vsyncpa [#allocation6], 0
    %16 = vsyncpa [#allocation4], 0
    // Predicated region
    $region2: #{tpu_custom_call.1} parent=1 // pred_check
      _
    $region3: #{tpu_custom_call.1} parent=1 // pred_check_branch
      %18 = sbr.rel (0) target = $region5
    $region4: #{tpu_custom_call.1} parent=1 // pred_region
      _
    $region5: #{tpu_custom_call.1} parent=1 // pred_fallthru
      _
    // Predicated region
    $region6: #{tpu_custom_call.1} parent=1 // pred_check
      _
    $region7: #{tpu_custom_call.1} parent=1 // pred_check_branch
      %20 = sbr.rel (0) target = $region9
    $region8: #{tpu_custom_call.1} parent=1 // pred_region
      _
    $region9: #{tpu_custom_call.1} parent=1 // pred_fallthru
      _
    // Predicated region
    $region10: #{tpu_custom_call.1} parent=1 // pred_check
      _
    $region11: #{tpu_custom_call.1} parent=1 // pred_check_branch
      %22 = sbr.rel (0) target = $region13
    $region12: #{tpu_custom_call.1} parent=1 // pred_region
      _
    $region13: #{tpu_custom_call.1} parent=1 // pred_fallthru
      _
    // Predicated region
    $region14: #{tpu_custom_call.1} parent=1 // pred_check
      _
    $region15: #{tpu_custom_call.1} parent=1 // pred_check_branch
      %24 = sbr.rel (0) target = $region17
    $region16: #{tpu_custom_call.1} parent=1 // pred_region
      %s26 = ssub.s32 4096, 4096
      %27 = vsyncadd [#allocation3], %s26
      %s28 = sshll.u32 [#allocation2], 4
      %s29 = int_to_ptr.vmem [resolvable:$true] %s28
      %34 = dma.hbm_to_vmem [thread:$0]  %s3, 4096, %s29, [#allocation3], 128, 128, 8
    $region17: #{tpu_custom_call.1} parent=1 // pred_fallthru
      _
    // Predicated region
    $region18: #{tpu_custom_call.1} parent=1 // pred_check
      _
    $region19: #{tpu_custom_call.1} parent=1 // pred_check_branch
      %36 = sbr.rel (0) target = $region21
    $region20: #{tpu_custom_call.1} parent=1 // pred_region
      _
    $region21: #{tpu_custom_call.1} parent=1 // pred_fallthru
      _
    // Predicated region
    $region22: #{tpu_custom_call.1} parent=1 // pred_check
      _
    $region23: #{tpu_custom_call.1} parent=1 // pred_check_branch
      %38 = sbr.rel (0) target = $region25
    $region24: #{tpu_custom_call.1} parent=1 // pred_region
      %s40 = ssub.s32 4096, 4096
      %41 = vsyncadd [#allocation6], %s40
      %s42 = sshll.u32 [#allocation5], 4
      %s43 = int_to_ptr.vmem [resolvable:$true] %s42
      %48 = dma.hbm_to_vmem [thread:$0]  %s5, 4096, %s43, [#allocation6], 128, 128, 8
    $region25: #{tpu_custom_call.1} parent=1 // pred_fallthru
      _
    // Predicated region
    $region26: #{tpu_custom_call.1} parent=1 // pred_check
      _
    $region27: #{tpu_custom_call.1} parent=1 // pred_check_branch
      %50 = sbr.rel (0) target = $region29
    $region28: #{tpu_custom_call.1} parent=1 // pred_region
      _
    $region29: #{tpu_custom_call.1} parent=1 // pred_fallthru
      _
    // Predicated region
    $region30: #{tpu_custom_call.1} parent=1 // pred_check
      _
    $region31: #{tpu_custom_call.1} parent=1 // pred_check_branch
      %52 = sbr.rel (0) target = $region33
    $region32: #{tpu_custom_call.1} parent=1 // pred_region
      _
    $region33: #{tpu_custom_call.1} parent=1 // pred_fallthru
      _
    // Predicated region
    $region34: #{tpu_custom_call.1} parent=1 // pred_check
      _
    $region35: #{tpu_custom_call.1} parent=1 // pred_check_branch
      %54 = sbr.rel (0) target = $region37
    $region36: #{tpu_custom_call.1} parent=1 // pred_region
      _
    $region37: #{tpu_custom_call.1} parent=1 // pred_fallthru
      _
    // Predicated region
    $region38: #{tpu_custom_call.1} parent=1 // pred_check
      _
    $region39: #{tpu_custom_call.1} parent=1 // pred_check_branch
      %56 = sbr.rel (0) target = $region41
    $region40: #{tpu_custom_call.1} parent=1 // pred_region
      %57 = dma.done [#allocation3], 4096
    $region41: #{tpu_custom_call.1} parent=1 // pred_fallthru
      _
    // Predicated region
    $region42: #{tpu_custom_call.1} parent=1 // pred_check
      _
    $region43: #{tpu_custom_call.1} parent=1 // pred_check_branch
      %59 = sbr.rel (0) target = $region45
    $region44: #{tpu_custom_call.1} parent=1 // pred_region
      %60 = dma.done [#allocation6], 4096
    $region45: #{tpu_custom_call.1} parent=1 // pred_fallthru
      _
    %v62 = vld [vmem:[%s0] sm:$0xf]
    %v63 = vld [vmem:[%s0 + $0x4] sm:$0xf]
    %v64 = vld [vmem:[%s1] sm:$0xff]
    %v65 = vld [vmem:[%s1 + $0x8] sm:$0xff]
    %v66 = vld [vmem:[%s1 + $0x10] sm:$0xff]
    %v67 = vld [vmem:[%s1 + $0x18] sm:$0xff]
    %v68 = vld [vmem:[%s2] sm:$0x3]
    %v70 = vlaneseq
    %v71 = vshrl.u32 %v70, 7
    %v72 = vsub.s32 0, %v71
    %v73 = vrot.slane %v68, %v72
    %v74 = vlaneseq
    %v75 = vshrl.u32 %v74, 7
    %v76 = vsub.s32 1, %v75
    %v77 = vrot.slane %v68, %v76
    %v82 = vunpack.c.l.b16 %v62
    %v83 = vunpack.c.l.b16 %v63
    %v84 = vpack.c.b16 %v83, %v82
    %v89 = vunpack.c.l.b16 %v64
    %v90 = vunpack.c.h.b16 %v64
    %v91 = vunpack.c.l.b16 %v65
    %v92 = vunpack.c.h.b16 %v65
    %v93 = vunpack.c.l.b16 %v66
    %v94 = vunpack.c.h.b16 %v66
    %v95 = vunpack.c.l.b16 %v67
    %v96 = vunpack.c.h.b16 %v67
    %v97 = vpack.c.b16 %v91, %v89
    %v98 = vpack.c.b16 %v92, %v90
    %v99 = vpack.c.b16 %v95, %v93
    %v100 = vpack.c.b16 %v96, %v94
    %vm105 = vcmask 261120
    %v107 = vsel %vm105, %v84, 0
    %109 = vmatprep.subr.bf16.mxu0 %v98
    %110 = vmatpush1.bf16.msra.mxu0 %v97
    %111 = vmatprep.subr.bf16.mxu0 %v100
    %112 = vmatpush1.bf16.msra.mxu0 %v99
    %113 = vmatprep.subr.bf16.mxu0 0
    %114 = vmatpush1.bf16.msra.mxu0 0
    %115 = vmatprep.subr.bf16.mxu0 0
    %116 = vmatpush1.bf16.msra.mxu0 0
    %117 = vmatprep.subr.bf16.mxu0 0
    %118 = vmatpush1.bf16.msra.mxu0 0
    %119 = vmatprep.subr.bf16.mxu0 0
    %120 = vmatpush1.bf16.msra.mxu0 0
    %121 = vmatprep.subr.bf16.mxu0 0
    %122 = vmatpush1.bf16.msra.mxu0 0
    %123 = vmatprep.subr.bf16.mxu0 0
    %124 = vmatpush1.bf16.msra.mxu0 0
    %125 = vmatprep.subr.bf16.mxu0 0
    %126 = vmatpush1.bf16.msra.mxu0 0
    %127 = vmatprep.subr.bf16.mxu0 0
    %128 = vmatpush1.bf16.msra.mxu0 0
    %129 = vmatprep.subr.bf16.mxu0 0
    %130 = vmatpush1.bf16.msra.mxu0 0
    %131 = vmatprep.subr.bf16.mxu0 0
    %132 = vmatpush1.bf16.msra.mxu0 0
    %133 = vmatprep.subr.bf16.mxu0 0
    %134 = vmatpush1.bf16.msra.mxu0 0
    %135 = vmatprep.subr.bf16.mxu0 0
    %136 = vmatpush1.bf16.msra.mxu0 0
    %137 = vmatprep.subr.bf16.mxu0 0
    %138 = vmatpush1.bf16.msra.mxu0 0
    %139 = vmatprep.subr.bf16.mxu0 0
    %140 = vmatpush1.bf16.msra.mxu0 0
    %141 = vmatprep.mubr.bf16.mxu0 0
    %142 = vmatmul.mubr.bf16.gmra.mrb[0].mxu0 %v107
    %v143 = vpop.f32.mrb[0].mxu0
    %v144 = vadd.f32 %v73, %v143
    %v145 = vpop.f32.mrb[0].mxu0
    %v146 = vadd.f32 %v77, %v145
    %v147 = vpop.f32.mrb[0].mxu0
    %v148 = vadd.f32 %v73, %v147
    %v149 = vpop.f32.mrb[0].mxu0
    %v150 = vadd.f32 %v77, %v149
    %151 = vdwg.mxu0
    %v152 = vmax.f32 %v144, 0.0
    %v153 = vmax.f32 %v146, 0.0
    %v154 = vmax.f32 %v148, 0.0
    %v155 = vmax.f32 %v150, 0.0
    %v156 = vpack.c.bf16 %v154, %v152
    %v157 = vpack.c.bf16 %v155, %v153
    %v158 = vld [vmem:[#allocation2] sm:$0xff]
    %v159 = vld [vmem:[#allocation2 + $0x8] sm:$0xff]
    %v160 = vld [vmem:[#allocation2 + $0x10] sm:$0xff]
    %v161 = vld [vmem:[#allocation2 + $0x18] sm:$0xff]
    %v162 = vld [vmem:[#allocation2 + $0x20] sm:$0xff]
    %v163 = vld [vmem:[#allocation2 + $0x28] sm:$0xff]
    %v164 = vld [vmem:[#allocation2 + $0x30] sm:$0xff]
    %v165 = vld [vmem:[#allocation2 + $0x38] sm:$0xff]
    %v166 = vld [vmem:[#allocation2 + $0x40] sm:$0xff]
    %v167 = vld [vmem:[#allocation2 + $0x48] sm:$0xff]
    %v168 = vld [vmem:[#allocation2 + $0x50] sm:$0xff]
    %v169 = vld [vmem:[#allocation2 + $0x58] sm:$0xff]
    %v170 = vld [vmem:[#allocation2 + $0x60] sm:$0xff]
    %v171 = vld [vmem:[#allocation2 + $0x68] sm:$0xff]
    %v172 = vld [vmem:[#allocation2 + $0x70] sm:$0xff]
    %v173 = vld [vmem:[#allocation2 + $0x78] sm:$0xff]
    %v174 = vld [vmem:[#allocation2 + $0x80] sm:$0xff]
    %v175 = vld [vmem:[#allocation2 + $0x88] sm:$0xff]
    %v176 = vld [vmem:[#allocation2 + $0x90] sm:$0xff]
    %v177 = vld [vmem:[#allocation2 + $0x98] sm:$0xff]
    %v178 = vld [vmem:[#allocation2 + $0xa0] sm:$0xff]
    %v179 = vld [vmem:[#allocation2 + $0xa8] sm:$0xff]
    %v180 = vld [vmem:[#allocation2 + $0xb0] sm:$0xff]
    %v181 = vld [vmem:[#allocation2 + $0xb8] sm:$0xff]
    %v182 = vld [vmem:[#allocation2 + $0xc0] sm:$0xff]
    %v183 = vld [vmem:[#allocation2 + $0xc8] sm:$0xff]
    %v184 = vld [vmem:[#allocation2 + $0xd0] sm:$0xff]
    %v185 = vld [vmem:[#allocation2 + $0xd8] sm:$0xff]
    %v186 = vld [vmem:[#allocation2 + $0xe0] sm:$0xff]
    %v187 = vld [vmem:[#allocation2 + $0xe8] sm:$0xff]
    %v188 = vld [vmem:[#allocation2 + $0xf0] sm:$0xff]
    %v189 = vld [vmem:[#allocation2 + $0xf8] sm:$0xff]
    %v190 = vld [vmem:[%s4] sm:$0x3]
    %v192 = vlaneseq
    %v193 = vshrl.u32 %v192, 7
    %v194 = vsub.s32 0, %v193
    %v195 = vrot.slane %v190, %v194
    %v196 = vlaneseq
    %v197 = vshrl.u32 %v196, 7
    %v198 = vsub.s32 1, %v197
    %v199 = vrot.slane %v190, %v198
    %v234 = vunpack.c.l.b16 %v158
    %v235 = vunpack.c.h.b16 %v158
    %v236 = vunpack.c.l.b16 %v159
    %v237 = vunpack.c.h.b16 %v159
    %v238 = vunpack.c.l.b16 %v160
    %v239 = vunpack.c.h.b16 %v160
    %v240 = vunpack.c.l.b16 %v161
    %v241 = vunpack.c.h.b16 %v161
    %v242 = vunpack.c.l.b16 %v162
    %v243 = vunpack.c.h.b16 %v162
    %v244 = vunpack.c.l.b16 %v163
    %v245 = vunpack.c.h.b16 %v163
    %v246 = vunpack.c.l.b16 %v164
    %v247 = vunpack.c.h.b16 %v164
    %v248 = vunpack.c.l.b16 %v165
    %v249 = vunpack.c.h.b16 %v165
    %v250 = vunpack.c.l.b16 %v166
    %v251 = vunpack.c.h.b16 %v166
    %v252 = vunpack.c.l.b16 %v167
    %v253 = vunpack.c.h.b16 %v167
    %v254 = vunpack.c.l.b16 %v168
    %v255 = vunpack.c.h.b16 %v168
    %v256 = vunpack.c.l.b16 %v169
    %v257 = vunpack.c.h.b16 %v169
    %v258 = vunpack.c.l.b16 %v170
    %v259 = vunpack.c.h.b16 %v170
    %v260 = vunpack.c.l.b16 %v171
    %v261 = vunpack.c.h.b16 %v171
    %v262 = vunpack.c.l.b16 %v172
    %v263 = vunpack.c.h.b16 %v172
    %v264 = vunpack.c.l.b16 %v173
    %v265 = vunpack.c.h.b16 %v173
    %v266 = vunpack.c.l.b16 %v174
    %v267 = vunpack.c.h.b16 %v174
    %v268 = vunpack.c.l.b16 %v175
    %v269 = vunpack.c.h.b16 %v175
    %v270 = vunpack.c.l.b16 %v176
    %v271 = vunpack.c.h.b16 %v176
    %v272 = vunpack.c.l.b16 %v177
    %v273 = vunpack.c.h.b16 %v177
    %v274 = vunpack.c.l.b16 %v178
    %v275 = vunpack.c.h.b16 %v178
    %v276 = vunpack.c.l.b16 %v179
    %v277 = vunpack.c.h.b16 %v179
    %v278 = vunpack.c.l.b16 %v180
    %v279 = vunpack.c.h.b16 %v180
    %v280 = vunpack.c.l.b16 %v181
    %v281 = vunpack.c.h.b16 %v181
    %v282 = vunpack.c.l.b16 %v182
    %v283 = vunpack.c.h.b16 %v182
    %v284 = vunpack.c.l.b16 %v183
    %v285 = vunpack.c.h.b16 %v183
    %v286 = vunpack.c.l.b16 %v184
    %v287 = vunpack.c.h.b16 %v184
    %v288 = vunpack.c.l.b16 %v185
    %v289 = vunpack.c.h.b16 %v185
    %v290 = vunpack.c.l.b16 %v186
    %v291 = vunpack.c.h.b16 %v186
    %v292 = vunpack.c.l.b16 %v187
    %v293 = vunpack.c.h.b16 %v187
    %v294 = vunpack.c.l.b16 %v188
    %v295 = vunpack.c.h.b16 %v188
    %v296 = vunpack.c.l.b16 %v189
    %v297 = vunpack.c.h.b16 %v189
    %v298 = vpack.c.b16 %v236, %v234
    %v299 = vpack.c.b16 %v237, %v235
    %v300 = vpack.c.b16 %v240, %v238
    %v301 = vpack.c.b16 %v241, %v239
    %v302 = vpack.c.b16 %v244, %v242
    %v303 = vpack.c.b16 %v245, %v243
    %v304 = vpack.c.b16 %v248, %v246
    %v305 = vpack.c.b16 %v249, %v247
    %v306 = vpack.c.b16 %v252, %v250
    %v307 = vpack.c.b16 %v253, %v251
    %v308 = vpack.c.b16 %v256, %v254
    %v309 = vpack.c.b16 %v257, %v255
    %v310 = vpack.c.b16 %v260, %v258
    %v311 = vpack.c.b16 %v261, %v259
    %v312 = vpack.c.b16 %v264, %v262
    %v313 = vpack.c.b16 %v265, %v263
    %v314 = vpack.c.b16 %v268, %v266
    %v315 = vpack.c.b16 %v269, %v267
    %v316 = vpack.c.b16 %v272, %v270
    %v317 = vpack.c.b16 %v273, %v271
    %v318 = vpack.c.b16 %v276, %v274
    %v319 = vpack.c.b16 %v277, %v275
    %v320 = vpack.c.b16 %v280, %v278
    %v321 = vpack.c.b16 %v281, %v279
    %v322 = vpack.c.b16 %v284, %v282
    %v323 = vpack.c.b16 %v285, %v283
    %v324 = vpack.c.b16 %v288, %v286
    %v325 = vpack.c.b16 %v289, %v287
    %v326 = vpack.c.b16 %v292, %v290
    %v327 = vpack.c.b16 %v293, %v291
    %v328 = vpack.c.b16 %v296, %v294
    %v329 = vpack.c.b16 %v297, %v295
    %362 = vmatprep.subr.bf16.mxu0 %v299
    %363 = vmatpush1.bf16.msra.mxu0 %v298
    %364 = vmatprep.subr.bf16.mxu0 %v301
    %365 = vmatpush1.bf16.msra.mxu0 %v300
    %366 = vmatprep.subr.bf16.mxu0 %v303
    %367 = vmatpush1.bf16.msra.mxu0 %v302
    %368 = vmatprep.subr.bf16.mxu0 %v305
    %369 = vmatpush1.bf16.msra.mxu0 %v304
    %370 = vmatprep.subr.bf16.mxu0 %v307
    %371 = vmatpush1.bf16.msra.mxu0 %v306
    %372 = vmatprep.subr.bf16.mxu0 %v309
    %373 = vmatpush1.bf16.msra.mxu0 %v308
    %374 = vmatprep.subr.bf16.mxu0 %v311
    %375 = vmatpush1.bf16.msra.mxu0 %v310
    %376 = vmatprep.subr.bf16.mxu0 %v313
    %377 = vmatpush1.bf16.msra.mxu0 %v312
    %378 = vmatprep.subr.bf16.mxu0 %v315
    %379 = vmatpush1.bf16.msra.mxu0 %v314
    %380 = vmatprep.subr.bf16.mxu0 %v317
    %381 = vmatpush1.bf16.msra.mxu0 %v316
    %382 = vmatprep.subr.bf16.mxu0 %v319
    %383 = vmatpush1.bf16.msra.mxu0 %v318
    %384 = vmatprep.subr.bf16.mxu0 %v321
    %385 = vmatpush1.bf16.msra.mxu0 %v320
    %386 = vmatprep.subr.bf16.mxu0 %v323
    %387 = vmatpush1.bf16.msra.mxu0 %v322
    %388 = vmatprep.subr.bf16.mxu0 %v325
    %389 = vmatpush1.bf16.msra.mxu0 %v324
    %390 = vmatprep.subr.bf16.mxu0 %v327
    %391 = vmatpush1.bf16.msra.mxu0 %v326
    %392 = vmatprep.subr.bf16.mxu0 %v329
    %393 = vmatpush1.bf16.msra.mxu0 %v328
    %394 = vmatprep.mubr.bf16.mxu0 %v157
    %395 = vmatmul.mubr.bf16.gmra.mrb[0].mxu0 %v156
    %v396 = vpop.f32.mrb[0].mxu0
    %v397 = vadd.f32 %v195, %v396
    %v398 = vpop.f32.mrb[0].mxu0
    %v399 = vadd.f32 %v199, %v398
    %v400 = vpop.f32.mrb[0].mxu0
    %v401 = vadd.f32 %v195, %v400
    %v402 = vpop.f32.mrb[0].mxu0
    %v403 = vadd.f32 %v199, %v402
    %404 = vdwg.mxu0
    %v405 = vmax.f32 %v397, 0.0
    %v406 = vmax.f32 %v399, 0.0
    %v407 = vmax.f32 %v401, 0.0
    %v408 = vmax.f32 %v403, 0.0
    %v409 = vpack.c.bf16 %v407, %v405
    %v410 = vpack.c.bf16 %v408, %v406
    %v411 = vld [vmem:[#allocation5] sm:$0xff]
    %v412 = vld [vmem:[#allocation5 + $0x8] sm:$0xff]
    %v413 = vld [vmem:[#allocation5 + $0x10] sm:$0xff]
    %v414 = vld [vmem:[#allocation5 + $0x18] sm:$0xff]
    %v415 = vld [vmem:[#allocation5 + $0x20] sm:$0xff]
    %v416 = vld [vmem:[#allocation5 + $0x28] sm:$0xff]
    %v417 = vld [vmem:[#allocation5 + $0x30] sm:$0xff]
    %v418 = vld [vmem:[#allocation5 + $0x38] sm:$0xff]
    %v419 = vld [vmem:[#allocation5 + $0x40] sm:$0xff]
    %v420 = vld [vmem:[#allocation5 + $0x48] sm:$0xff]
    %v421 = vld [vmem:[#allocation5 + $0x50] sm:$0xff]
    %v422 = vld [vmem:[#allocation5 + $0x58] sm:$0xff]
    %v423 = vld [vmem:[#allocation5 + $0x60] sm:$0xff]
    %v424 = vld [vmem:[#allocation5 + $0x68] sm:$0xff]
    %v425 = vld [vmem:[#allocation5 + $0x70] sm:$0xff]
    %v426 = vld [vmem:[#allocation5 + $0x78] sm:$0xff]
    %v427 = vld [vmem:[#allocation5 + $0x80] sm:$0xff]
    %v428 = vld [vmem:[#allocation5 + $0x88] sm:$0xff]
    %v429 = vld [vmem:[#allocation5 + $0x90] sm:$0xff]
    %v430 = vld [vmem:[#allocation5 + $0x98] sm:$0xff]
    %v431 = vld [vmem:[#allocation5 + $0xa0] sm:$0xff]
    %v432 = vld [vmem:[#allocation5 + $0xa8] sm:$0xff]
    %v433 = vld [vmem:[#allocation5 + $0xb0] sm:$0xff]
    %v434 = vld [vmem:[#allocation5 + $0xb8] sm:$0xff]
    %v435 = vld [vmem:[#allocation5 + $0xc0] sm:$0xff]
    %v436 = vld [vmem:[#allocation5 + $0xc8] sm:$0xff]
    %v437 = vld [vmem:[#allocation5 + $0xd0] sm:$0xff]
    %v438 = vld [vmem:[#allocation5 + $0xd8] sm:$0xff]
    %v439 = vld [vmem:[#allocation5 + $0xe0] sm:$0xff]
    %v440 = vld [vmem:[#allocation5 + $0xe8] sm:$0xff]
    %v441 = vld [vmem:[#allocation5 + $0xf0] sm:$0xff]
    %v442 = vld [vmem:[#allocation5 + $0xf8] sm:$0xff]
    %v443 = vld [vmem:[%s6] sm:$0x3]
    %v445 = vlaneseq
    %v446 = vshrl.u32 %v445, 7
    %v447 = vsub.s32 0, %v446
    %v448 = vrot.slane %v443, %v447
    %v449 = vlaneseq
    %v450 = vshrl.u32 %v449, 7
    %v451 = vsub.s32 1, %v450
    %v452 = vrot.slane %v443, %v451
    %v487 = vunpack.c.l.b16 %v411
    %v488 = vunpack.c.h.b16 %v411
    %v489 = vunpack.c.l.b16 %v412
    %v490 = vunpack.c.h.b16 %v412
    %v491 = vunpack.c.l.b16 %v413
    %v492 = vunpack.c.h.b16 %v413
    %v493 = vunpack.c.l.b16 %v414
    %v494 = vunpack.c.h.b16 %v414
    %v495 = vunpack.c.l.b16 %v415
    %v496 = vunpack.c.h.b16 %v415
    %v497 = vunpack.c.l.b16 %v416
    %v498 = vunpack.c.h.b16 %v416
    %v499 = vunpack.c.l.b16 %v417
    %v500 = vunpack.c.h.b16 %v417
    %v501 = vunpack.c.l.b16 %v418
    %v502 = vunpack.c.h.b16 %v418
    %v503 = vunpack.c.l.b16 %v419
    %v504 = vunpack.c.h.b16 %v419
    %v505 = vunpack.c.l.b16 %v420
    %v506 = vunpack.c.h.b16 %v420
    %v507 = vunpack.c.l.b16 %v421
    %v508 = vunpack.c.h.b16 %v421
    %v509 = vunpack.c.l.b16 %v422
    %v510 = vunpack.c.h.b16 %v422
    %v511 = vunpack.c.l.b16 %v423
    %v512 = vunpack.c.h.b16 %v423
    %v513 = vunpack.c.l.b16 %v424
    %v514 = vunpack.c.h.b16 %v424
    %v515 = vunpack.c.l.b16 %v425
    %v516 = vunpack.c.h.b16 %v425
    %v517 = vunpack.c.l.b16 %v426
    %v518 = vunpack.c.h.b16 %v426
    %v519 = vunpack.c.l.b16 %v427
    %v520 = vunpack.c.h.b16 %v427
    %v521 = vunpack.c.l.b16 %v428
    %v522 = vunpack.c.h.b16 %v428
    %v523 = vunpack.c.l.b16 %v429
    %v524 = vunpack.c.h.b16 %v429
    %v525 = vunpack.c.l.b16 %v430
    %v526 = vunpack.c.h.b16 %v430
    %v527 = vunpack.c.l.b16 %v431
    %v528 = vunpack.c.h.b16 %v431
    %v529 = vunpack.c.l.b16 %v432
    %v530 = vunpack.c.h.b16 %v432
    %v531 = vunpack.c.l.b16 %v433
    %v532 = vunpack.c.h.b16 %v433
    %v533 = vunpack.c.l.b16 %v434
    %v534 = vunpack.c.h.b16 %v434
    %v535 = vunpack.c.l.b16 %v435
    %v536 = vunpack.c.h.b16 %v435
    %v537 = vunpack.c.l.b16 %v436
    %v538 = vunpack.c.h.b16 %v436
    %v539 = vunpack.c.l.b16 %v437
    %v540 = vunpack.c.h.b16 %v437
    %v541 = vunpack.c.l.b16 %v438
    %v542 = vunpack.c.h.b16 %v438
    %v543 = vunpack.c.l.b16 %v439
    %v544 = vunpack.c.h.b16 %v439
    %v545 = vunpack.c.l.b16 %v440
    %v546 = vunpack.c.h.b16 %v440
    %v547 = vunpack.c.l.b16 %v441
    %v548 = vunpack.c.h.b16 %v441
    %v549 = vunpack.c.l.b16 %v442
    %v550 = vunpack.c.h.b16 %v442
    %v551 = vpack.c.b16 %v489, %v487
    %v552 = vpack.c.b16 %v490, %v488
    %v553 = vpack.c.b16 %v493, %v491
    %v554 = vpack.c.b16 %v494, %v492
    %v555 = vpack.c.b16 %v497, %v495
    %v556 = vpack.c.b16 %v498, %v496
    %v557 = vpack.c.b16 %v501, %v499
    %v558 = vpack.c.b16 %v502, %v500
    %v559 = vpack.c.b16 %v505, %v503
    %v560 = vpack.c.b16 %v506, %v504
    %v561 = vpack.c.b16 %v509, %v507
    %v562 = vpack.c.b16 %v510, %v508
    %v563 = vpack.c.b16 %v513, %v511
    %v564 = vpack.c.b16 %v514, %v512
    %v565 = vpack.c.b16 %v517, %v515
    %v566 = vpack.c.b16 %v518, %v516
    %v567 = vpack.c.b16 %v521, %v519
    %v568 = vpack.c.b16 %v522, %v520
    %v569 = vpack.c.b16 %v525, %v523
    %v570 = vpack.c.b16 %v526, %v524
    %v571 = vpack.c.b16 %v529, %v527
    %v572 = vpack.c.b16 %v530, %v528
    %v573 = vpack.c.b16 %v533, %v531
    %v574 = vpack.c.b16 %v534, %v532
    %v575 = vpack.c.b16 %v537, %v535
    %v576 = vpack.c.b16 %v538, %v536
    %v577 = vpack.c.b16 %v541, %v539
    %v578 = vpack.c.b16 %v542, %v540
    %v579 = vpack.c.b16 %v545, %v543
    %v580 = vpack.c.b16 %v546, %v544
    %v581 = vpack.c.b16 %v549, %v547
    %v582 = vpack.c.b16 %v550, %v548
    %615 = vmatprep.subr.bf16.mxu0 %v552
    %616 = vmatpush1.bf16.msra.mxu0 %v551
    %617 = vmatprep.subr.bf16.mxu0 %v554
    %618 = vmatpush1.bf16.msra.mxu0 %v553
    %619 = vmatprep.subr.bf16.mxu0 %v556
    %620 = vmatpush1.bf16.msra.mxu0 %v555
    %621 = vmatprep.subr.bf16.mxu0 %v558
    %622 = vmatpush1.bf16.msra.mxu0 %v557
    %623 = vmatprep.subr.bf16.mxu0 %v560
    %624 = vmatpush1.bf16.msra.mxu0 %v559
    %625 = vmatprep.subr.bf16.mxu0 %v562
    %626 = vmatpush1.bf16.msra.mxu0 %v561
    %627 = vmatprep.subr.bf16.mxu0 %v564
    %628 = vmatpush1.bf16.msra.mxu0 %v563
    %629 = vmatprep.subr.bf16.mxu0 %v566
    %630 = vmatpush1.bf16.msra.mxu0 %v565
    %631 = vmatprep.subr.bf16.mxu0 %v568
    %632 = vmatpush1.bf16.msra.mxu0 %v567
    %633 = vmatprep.subr.bf16.mxu0 %v570
    %634 = vmatpush1.bf16.msra.mxu0 %v569
    %635 = vmatprep.subr.bf16.mxu0 %v572
    %636 = vmatpush1.bf16.msra.mxu0 %v571
    %637 = vmatprep.subr.bf16.mxu0 %v574
    %638 = vmatpush1.bf16.msra.mxu0 %v573
    %639 = vmatprep.subr.bf16.mxu0 %v576
    %640 = vmatpush1.bf16.msra.mxu0 %v575
    %641 = vmatprep.subr.bf16.mxu0 %v578
    %642 = vmatpush1.bf16.msra.mxu0 %v577
    %643 = vmatprep.subr.bf16.mxu0 %v580
    %644 = vmatpush1.bf16.msra.mxu0 %v579
    %645 = vmatprep.subr.bf16.mxu0 %v582
    %646 = vmatpush1.bf16.msra.mxu0 %v581
    %647 = vmatprep.mubr.bf16.mxu0 %v410
    %648 = vmatmul.mubr.bf16.gmra.mrb[0].mxu0 %v409
    %v649 = vpop.f32.mrb[0].mxu0
    %v650 = vadd.f32 %v448, %v649
    %v651 = vpop.f32.mrb[0].mxu0
    %v652 = vadd.f32 %v452, %v651
    %v653 = vpop.f32.mrb[0].mxu0
    %v654 = vadd.f32 %v448, %v653
    %v655 = vpop.f32.mrb[0].mxu0
    %v656 = vadd.f32 %v452, %v655
    %657 = vdwg.mxu0
    %v658 = vmax.f32 %v650, 0.0
    %v659 = vmax.f32 %v652, 0.0
    %v660 = vmax.f32 %v654, 0.0
    %v661 = vmax.f32 %v656, 0.0
    %v662 = vpack.c.bf16 %v660, %v658
    %v663 = vpack.c.bf16 %v661, %v659
    %v664 = vld [vmem:[%s7] sm:$0xf]
    %v665 = vld [vmem:[%s7 + $0x4] sm:$0xf]
    %v666 = vld [vmem:[%s7 + $0x8] sm:$0xf]
    %v667 = vld [vmem:[%s7 + $0xc] sm:$0xf]
    %v668 = vld [vmem:[%s7 + $0x10] sm:$0xf]
    %v669 = vld [vmem:[%s7 + $0x14] sm:$0xf]
    %v670 = vld [vmem:[%s7 + $0x18] sm:$0xf]
    %v671 = vld [vmem:[%s7 + $0x1c] sm:$0xf]
    %v672 = vld [vmem:[%s7 + $0x20] sm:$0xf]
    %v673 = vld [vmem:[%s7 + $0x24] sm:$0xf]
    %v674 = vld [vmem:[%s7 + $0x28] sm:$0xf]
    %v675 = vld [vmem:[%s7 + $0x2c] sm:$0xf]
    %v676 = vld [vmem:[%s7 + $0x30] sm:$0xf]
    %v677 = vld [vmem:[%s7 + $0x34] sm:$0xf]
    %v678 = vld [vmem:[%s7 + $0x38] sm:$0xf]
    %v679 = vld [vmem:[%s7 + $0x3c] sm:$0xf]
    %v680 = vld [vmem:[%s7 + $0x40] sm:$0xf]
    %v681 = vld [vmem:[%s7 + $0x44] sm:$0xf]
    %v682 = vld [vmem:[%s7 + $0x48] sm:$0xf]
    %v683 = vld [vmem:[%s7 + $0x4c] sm:$0xf]
    %v684 = vld [vmem:[%s7 + $0x50] sm:$0xf]
    %v685 = vld [vmem:[%s7 + $0x54] sm:$0xf]
    %v686 = vld [vmem:[%s7 + $0x58] sm:$0xf]
    %v687 = vld [vmem:[%s7 + $0x5c] sm:$0xf]
    %v688 = vld [vmem:[%s7 + $0x60] sm:$0xf]
    %v689 = vld [vmem:[%s7 + $0x64] sm:$0xf]
    %v690 = vld [vmem:[%s7 + $0x68] sm:$0xf]
    %v691 = vld [vmem:[%s7 + $0x6c] sm:$0xf]
    %v692 = vld [vmem:[%s7 + $0x70] sm:$0xf]
    %v693 = vld [vmem:[%s7 + $0x74] sm:$0xf]
    %v694 = vld [vmem:[%s7 + $0x78] sm:$0xf]
    %v695 = vld [vmem:[%s7 + $0x7c] sm:$0xf]
    %v696 = vld [vmem:[%s8] sm:$0x1]
    %v698 = vlaneseq
    %v699 = vshrl.u32 %v698, 7
    %v700 = vsub.s32 0, %v699
    %v701 = vrot.slane %v696, %v700
    %v735 = vunpack.c.l.b16 %v664
    %v736 = vunpack.c.l.b16 %v665
    %v737 = vunpack.c.l.b16 %v666
    %v738 = vunpack.c.l.b16 %v667
    %v739 = vunpack.c.l.b16 %v668
    %v740 = vunpack.c.l.b16 %v669
    %v741 = vunpack.c.l.b16 %v670
    %v742 = vunpack.c.l.b16 %v671
    %v743 = vunpack.c.l.b16 %v672
    %v744 = vunpack.c.l.b16 %v673
    %v745 = vunpack.c.l.b16 %v674
    %v746 = vunpack.c.l.b16 %v675
    %v747 = vunpack.c.l.b16 %v676
    %v748 = vunpack.c.l.b16 %v677
    %v749 = vunpack.c.l.b16 %v678
    %v750 = vunpack.c.l.b16 %v679
    %v751 = vunpack.c.l.b16 %v680
    %v752 = vunpack.c.l.b16 %v681
    %v753 = vunpack.c.l.b16 %v682
    %v754 = vunpack.c.l.b16 %v683
    %v755 = vunpack.c.l.b16 %v684
    %v756 = vunpack.c.l.b16 %v685
    %v757 = vunpack.c.l.b16 %v686
    %v758 = vunpack.c.l.b16 %v687
    %v759 = vunpack.c.l.b16 %v688
    %v760 = vunpack.c.l.b16 %v689
    %v761 = vunpack.c.l.b16 %v690
    %v762 = vunpack.c.l.b16 %v691
    %v763 = vunpack.c.l.b16 %v692
    %v764 = vunpack.c.l.b16 %v693
    %v765 = vunpack.c.l.b16 %v694
    %v766 = vunpack.c.l.b16 %v695
    %v767 = vpack.c.b16 %v736, %v735
    %v768 = vpack.c.b16 %v738, %v737
    %v769 = vpack.c.b16 %v740, %v739
    %v770 = vpack.c.b16 %v742, %v741
    %v771 = vpack.c.b16 %v744, %v743
    %v772 = vpack.c.b16 %v746, %v745
    %v773 = vpack.c.b16 %v748, %v747
    %v774 = vpack.c.b16 %v750, %v749
    %v775 = vpack.c.b16 %v752, %v751
    %v776 = vpack.c.b16 %v754, %v753
    %v777 = vpack.c.b16 %v756, %v755
    %v778 = vpack.c.b16 %v758, %v757
    %v779 = vpack.c.b16 %v760, %v759
    %v780 = vpack.c.b16 %v762, %v761
    %v781 = vpack.c.b16 %v764, %v763
    %v782 = vpack.c.b16 %v766, %v765
    %799 = vmatprep.subr.bf16.mxu0 0
    %800 = vmatpush1.bf16.msra.mxu0 %v767
    %801 = vmatprep.subr.bf16.mxu0 0
    %802 = vmatpush1.bf16.msra.mxu0 %v768
    %803 = vmatprep.subr.bf16.mxu0 0
    %804 = vmatpush1.bf16.msra.mxu0 %v769
    %805 = vmatprep.subr.bf16.mxu0 0
    %806 = vmatpush1.bf16.msra.mxu0 %v770
    %807 = vmatprep.subr.bf16.mxu0 0
    %808 = vmatpush1.bf16.msra.mxu0 %v771
    %809 = vmatprep.subr.bf16.mxu0 0
    %810 = vmatpush1.bf16.msra.mxu0 %v772
    %811 = vmatprep.subr.bf16.mxu0 0
    %812 = vmatpush1.bf16.msra.mxu0 %v773
    %813 = vmatprep.subr.bf16.mxu0 0
    %814 = vmatpush1.bf16.msra.mxu0 %v774
    %815 = vmatprep.subr.bf16.mxu0 0
    %816 = vmatpush1.bf16.msra.mxu0 %v775
    %817 = vmatprep.subr.bf16.mxu0 0
    %818 = vmatpush1.bf16.msra.mxu0 %v776
    %819 = vmatprep.subr.bf16.mxu0 0
    %820 = vmatpush1.bf16.msra.mxu0 %v777
    %821 = vmatprep.subr.bf16.mxu0 0
    %822 = vmatpush1.bf16.msra.mxu0 %v778
    %823 = vmatprep.subr.bf16.mxu0 0
    %824 = vmatpush1.bf16.msra.mxu0 %v779
    %825 = vmatprep.subr.bf16.mxu0 0
    %826 = vmatpush1.bf16.msra.mxu0 %v780
    %827 = vmatprep.subr.bf16.mxu0 0
    %828 = vmatpush1.bf16.msra.mxu0 %v781
    %829 = vmatprep.subr.bf16.mxu0 0
    %830 = vmatpush1.bf16.msra.mxu0 %v782
    %831 = vmatprep.mubr.bf16.mxu0 %v663
    %832 = vmatmul.mubr.bf16.gmra.mrb[0].mxu0 %v662
    %v833 = vpop.f32.mrb[0].mxu0
    %v834 = vadd.f32 %v701, %v833
    %v835 = vpop.f32.mrb[0].mxu0
    %v836 = vpop.f32.mrb[0].mxu0
    %v837 = vadd.f32 %v701, %v836
    %v838 = vpop.f32.mrb[0].mxu0
    %839 = vdwg.mxu0
    %vm840 = vcmask 523264
    %841 = vst.msk [vmem:[#allocation7] sm:$0xff] %vm840, %v834
    %842 = vst.msk [vmem:[#allocation7 + $0x8] sm:$0xff] %vm840, %v837
    // Predicated region
    $region46: #{tpu_custom_call.1} parent=1 // pred_check
      _
    $region47: #{tpu_custom_call.1} parent=1 // pred_check_branch
      %844 = sbr.rel (0) target = $region49
    $region48: #{tpu_custom_call.1} parent=1 // pred_region
      %s846 = ssub.s32 256, 256
      %847 = vsyncadd [#allocation4], %s846
      %s848 = sshll.u32 [#allocation7], 4
      %s849 = int_to_ptr.vmem [resolvable:$true] %s848
      %854 = dma.vmem_to_hbm [thread:$0]  %s849, 256, %s9, [#allocation4], 128, 128, 8
    $region49: #{tpu_custom_call.1} parent=1 // pred_fallthru
      _
    // Predicated region
    $region50: #{tpu_custom_call.1} parent=1 // pred_check
      _
    $region51: #{tpu_custom_call.1} parent=1 // pred_check_branch
      %856 = sbr.rel (0) target = $region53
    $region52: #{tpu_custom_call.1} parent=1 // pred_region
      %857 = dma.done [#allocation4], 256
    $region53: #{tpu_custom_call.1} parent=1 // pred_fallthru
      _
    %858 = vsyncpa [#allocation3], 1
    %859 = vsyncpa [#allocation6], 1
    %860 = vsyncpa [#allocation4], 1

</llo_original>
